<compile_context>
chip_gen: v7x
topology: tpu7x:2x2x1
jax: 0.10.0
libtpu: 0.0.40
codegen_flags: <defaults>
</compile_context>

<pallas_src>
import jax
import jax.numpy as jnp
from jax.experimental import pallas as pl
from jax.experimental.pallas import tpu as pltpu

IN_DIM = 784
HID_DIM = 100
OUT_DIM = 10
HID_PAD = 128   # 100 -> 128 (lane-dense)
OUT_PAD = 128   # 10  -> 128 (lane-dense, unmasked output store)

_INV_SQRT2 = 0.7071067811865475
_EPS = 1e-8


def _round_up(x, m):
    return (x + m - 1) // m * m


def _choose_tiling(batch, block_m):
    """Pick (bm, b_pad): sublane-aligned batch tile, padded batch size.

    Ensures >= 2 grid steps whenever the batch is large enough (>= 16 rows) so
    that dimension_semantics=("parallel",) can shard across v7x's two TCs.
    """
    b_pad = _round_up(batch, 8)
    bm = min(block_m, b_pad)
    if b_pad // bm < 2 and b_pad >= 16:
        bm = _round_up(b_pad // 2, 8)
    b_pad = _round_up(b_pad, bm)
    return bm, b_pad


def _gcnet_kernel(x_ref, w1_ref, w1sq_ref, b1_ref, w2_ref, b2_ref, mu_ref):
    """Fused forward for one batch tile.

    Shapes inside the kernel (VMEM resident):
      x_ref    : [BM, 784]   f32   input means (batch tile)
      w1_ref   : [784, 128]  bf16  fc1 weight, transposed + zero-padded
      w1sq_ref : [784, 128]  bf16  fc1 weight squared (precomputed)
      b1_ref   : [1, 128]    f32   fc1 bias, zero-padded
      w2_ref   : [128, 128]  bf16  fc2 weight, transposed + zero-padded
      b2_ref   : [1, 128]    f32   fc2 bias, zero-padded
      mu_ref   : [BM, 128]   f32   output mean (batch tile)
    """
    x_bf = x_ref[...].astype(jnp.bfloat16)

    # ---- fc1: GCLinear(784, 100) mean & variance ----
    mu1 = jnp.dot(x_bf, w1_ref[...],
                  preferred_element_type=jnp.float32) + b1_ref[...]
    var_in = x_bf - x_bf * x_bf                      # Bernoulli variance, bf16
    sigma2 = jnp.dot(var_in, w1sq_ref[...],
                     preferred_element_type=jnp.float32)

    # ---- gc_hardstep: p = Phi(mu / sigma), f32 epilogue ----
    inv_std = jax.lax.rsqrt(sigma2 + _EPS)
    z = mu1 * inv_std
    p = 0.5 * (1.0 + jax.lax.erf(z * _INV_SQRT2))

    # ---- fc2: GCLinear(100, 10) mean (the returned value) ----
    mu2 = jnp.dot(p.astype(jnp.bfloat16), w2_ref[...],
                  preferred_element_type=jnp.float32) + b2_ref[...]

    mu_ref[...] = mu2


def pack_gcnet_params(w1, b1, w2, b2):
    """One-time weight packing (hoisted off the per-call path).

    Weights come in PyTorch nn.Linear layout: w1 [100,784], b1 [100],
    w2 [10,100], b2 [10]. Returns MXU-ready padded/transposed tensors.
    """
    w1_t = jnp.transpose(w1).astype(jnp.float32)                 # [784, 100]
    w1_pad = jnp.zeros((IN_DIM, HID_PAD), jnp.float32).at[:, :HID_DIM].set(w1_t)
    w1_bf = w1_pad.astype(jnp.bfloat16)
    w1sq_bf = (w1_pad * w1_pad).astype(jnp.bfloat16)

    b1_pad = jnp.zeros((1, HID_PAD), jnp.float32)
    b1_pad = b1_pad.at[0, :HID_DIM].set(b1.astype(jnp.float32))

    w2_t = jnp.transpose(w2).astype(jnp.float32)                 # [100, 10]
    w2_pad = jnp.zeros((HID_PAD, OUT_PAD), jnp.float32)
    # NOTE: rows 100..127 / cols 10..127 MUST stay zero so padded hidden units
    # (which evaluate to p = 0.5) cannot leak into mu2.
    w2_pad = w2_pad.at[:HID_DIM, :OUT_DIM].set(w2_t)
    w2_bf = w2_pad.astype(jnp.bfloat16)

    b2_pad = jnp.zeros((1, OUT_PAD), jnp.float32)
    b2_pad = b2_pad.at[0, :OUT_DIM].set(b2.astype(jnp.float32))

    return {"w1": w1_bf, "w1sq": w1sq_bf, "b1": b1_pad,
            "w2": w2_bf, "b2": b2_pad}


def gcnet_forward(x, params, *, block_m=512):
    """x: [B, 784] f32 in [0,1]. params: output of pack_gcnet_params.
    Returns mu: [B, 10] f32."""
    B = x.shape[0]
    bm, b_pad = _choose_tiling(B, block_m)
    grid = (b_pad // bm,)

    x = x.astype(jnp.float32)
    if b_pad != B:
        x = jnp.pad(x, ((0, b_pad - B), (0, 0)))

    out = pl.pallas_call(
        _gcnet_kernel,
        out_shape=jax.ShapeDtypeStruct((b_pad, OUT_PAD), jnp.float32),
        grid_spec=pltpu.PrefetchScalarGridSpec(
            num_scalar_prefetch=0,
            grid=grid,
            in_specs=[
                pl.BlockSpec((bm, IN_DIM), lambda i: (i, 0)),       # x tile
                pl.BlockSpec((IN_DIM, HID_PAD), lambda i: (0, 0)),  # w1 (resident)
                pl.BlockSpec((IN_DIM, HID_PAD), lambda i: (0, 0)),  # w1^2 (resident)
                pl.BlockSpec((1, HID_PAD), lambda i: (0, 0)),       # b1
                pl.BlockSpec((HID_PAD, OUT_PAD), lambda i: (0, 0)), # w2 (resident)
                pl.BlockSpec((1, OUT_PAD), lambda i: (0, 0)),       # b2
            ],
            out_specs=pl.BlockSpec((bm, OUT_PAD), lambda i: (i, 0)),
        ),
        compiler_params=pltpu.CompilerParams(
            dimension_semantics=("parallel",),     # shard batch over 2 TCs (v7x)
            vmem_limit_bytes=32 << 20,             # headroom on v5e's 16 MiB default
        ),
    )(x, params["w1"], params["w1sq"], params["b1"], params["w2"], params["b2"])

    return out[:B, :OUT_DIM]


if __name__ == "__main__":
    key = jax.random.PRNGKey(0)
    kx, k1, k2, k3, k4 = jax.random.split(key, 5)

    B = 2  # small demo batch; feature dims fixed by the module (784 -> 100 -> 10)
    # Pixel-like inputs in [0, 1] (MNIST-style) so x*(1-x) is a valid variance.
    x = jax.random.uniform(kx, (B, IN_DIM), dtype=jnp.float32)

    # Deterministic synthetic parameters (PyTorch nn.Linear layout [out, in]).
    w1 = jax.random.normal(k1, (HID_DIM, IN_DIM), dtype=jnp.float32) / jnp.sqrt(
        jnp.float32(IN_DIM))
    b1 = 0.01 * jax.random.normal(k2, (HID_DIM,), dtype=jnp.float32)
    w2 = jax.random.normal(k3, (OUT_DIM, HID_DIM), dtype=jnp.float32) / jnp.sqrt(
        jnp.float32(HID_DIM))
    b2 = 0.01 * jax.random.normal(k4, (OUT_DIM,), dtype=jnp.float32)

    params = pack_gcnet_params(w1, b1, w2, b2)   # packed once, reused per call
    mu = gcnet_forward(x, params)
    jax.block_until_ready(mu)

    assert mu.shape == (B, OUT_DIM) and mu.dtype == jnp.float32
    assert bool(jnp.all(jnp.isfinite(mu)))

    # Pure-JAX f32 reference (loose tolerance: kernel uses bf16 MXU operands).
    mu1_r = x @ w1.T + b1
    sig_r = (x * (1.0 - x)) @ (w1 * w1).T
    p_r = 0.5 * (1.0 + jax.lax.erf(mu1_r * jax.lax.rsqrt(sig_r + _EPS) * _INV_SQRT2))
    mu_r = p_r @ w2.T + b2
    assert float(jnp.max(jnp.abs(mu - mu_r))) < 0.1, "kernel diverges from reference"

    print("KERNEL_OK")
</pallas_src>

<mosaic_0001>
module attributes {stable_mosaic.version = 11 : i64} {
  func.func @_gcnet_kernel(%arg0: i32, %arg1: memref<8x784xf32, #tpu.memory_space<vmem>>, %arg2: memref<784x128xbf16, #tpu.memory_space<vmem>>, %arg3: memref<784x128xbf16, #tpu.memory_space<vmem>>, %arg4: memref<1x128xf32, #tpu.memory_space<vmem>>, %arg5: memref<128x128xbf16, #tpu.memory_space<vmem>>, %arg6: memref<1x128xf32, #tpu.memory_space<vmem>>, %arg7: memref<8x128xf32, #tpu.memory_space<vmem>>) attributes {dimension_semantics = [#tpu.dimension_semantics<parallel>], iteration_bounds = array<i64: 1>, scalar_prefetch = 0 : i64, scratch_operands = 0 : i64, tpu.core_type = #tpu.core_type<tc>, window_params = [{transform_indices = @transform_0, window_bounds = array<i64: 8, 784>}, {pipeline_mode = #tpu.pipeline_mode<synchronous>, transform_indices = @transform_1, window_bounds = array<i64: 784, 128>}, {pipeline_mode = #tpu.pipeline_mode<synchronous>, transform_indices = @transform_2, window_bounds = array<i64: 784, 128>}, {pipeline_mode = #tpu.pipeline_mode<synchronous>, transform_indices = @transform_3, window_bounds = array<i64: 1, 128>}, {pipeline_mode = #tpu.pipeline_mode<synchronous>, transform_indices = @transform_4, window_bounds = array<i64: 128, 128>}, {pipeline_mode = #tpu.pipeline_mode<synchronous>, transform_indices = @transform_5, window_bounds = array<i64: 1, 128>}, {transform_indices = @transform_6, window_bounds = array<i64: 8, 128>}]} {
    %c0 = arith.constant 0 : index
    %c0_0 = arith.constant 0 : index
    %0 = vector.load %arg1[%c0, %c0_0] : memref<8x784xf32, #tpu.memory_space<vmem>>, vector<8x784xf32>
    %1 = arith.truncf %0 : vector<8x784xf32> to vector<8x784xbf16>
    %c0_1 = arith.constant 0 : index
    %c0_2 = arith.constant 0 : index
    %2 = vector.load %arg2[%c0_1, %c0_2] : memref<784x128xbf16, #tpu.memory_space<vmem>>, vector<784x128xbf16>
    %cst = arith.constant dense<0.000000e+00> : vector<8x128xf32>
    %3 = tpu.matmul %1, %2, %cst {dimension_numbers = #tpu.dot_dimension_numbers<[1], [0], [0], [1], [0, 0, 1, 1], [], []>} : vector<8x784xbf16>, vector<784x128xbf16>, vector<8x128xf32> -> vector<8x128xf32>
    %c0_3 = arith.constant 0 : index
    %c0_4 = arith.constant 0 : index
    %4 = vector.load %arg4[%c0_3, %c0_4] : memref<1x128xf32, #tpu.memory_space<vmem>>, vector<1x128xf32>
    %5 = vector.broadcast %4 : vector<1x128xf32> to vector<8x128xf32>
    %6 = arith.addf %3, %5 : vector<8x128xf32>
    %7 = arith.mulf %1, %1 : vector<8x784xbf16>
    %8 = arith.subf %1, %7 : vector<8x784xbf16>
    %c0_5 = arith.constant 0 : index
    %c0_6 = arith.constant 0 : index
    %9 = vector.load %arg3[%c0_5, %c0_6] : memref<784x128xbf16, #tpu.memory_space<vmem>>, vector<784x128xbf16>
    %cst_7 = arith.constant dense<0.000000e+00> : vector<8x128xf32>
    %10 = tpu.matmul %8, %9, %cst_7 {dimension_numbers = #tpu.dot_dimension_numbers<[1], [0], [0], [1], [0, 0, 1, 1], [], []>} : vector<8x784xbf16>, vector<784x128xbf16>, vector<8x128xf32> -> vector<8x128xf32>
    %cst_8 = arith.constant 9.99999993E-9 : f32
    %11 = vector.broadcast %cst_8 : f32 to vector<8x128xf32>
    %12 = arith.addf %10, %11 : vector<8x128xf32>
    %13 = math.rsqrt %12 : vector<8x128xf32>
    %14 = arith.mulf %6, %13 : vector<8x128xf32>
    %cst_9 = arith.constant 0.707106769 : f32
    %15 = vector.broadcast %cst_9 : f32 to vector<8x128xf32>
    %16 = arith.mulf %14, %15 : vector<8x128xf32>
    %17 = math.erf %16 : vector<8x128xf32>
    %cst_10 = arith.constant 1.000000e+00 : f32
    %18 = vector.broadcast %cst_10 : f32 to vector<8x128xf32>
    %19 = arith.addf %18, %17 : vector<8x128xf32>
    %cst_11 = arith.constant 5.000000e-01 : f32
    %20 = vector.broadcast %cst_11 : f32 to vector<8x128xf32>
    %21 = arith.mulf %20, %19 : vector<8x128xf32>
    %22 = arith.truncf %21 : vector<8x128xf32> to vector<8x128xbf16>
    %c0_12 = arith.constant 0 : index
    %c0_13 = arith.constant 0 : index
    %23 = vector.load %arg5[%c0_12, %c0_13] : memref<128x128xbf16, #tpu.memory_space<vmem>>, vector<128x128xbf16>
    %cst_14 = arith.constant dense<0.000000e+00> : vector<8x128xf32>
    %24 = tpu.matmul %22, %23, %cst_14 {dimension_numbers = #tpu.dot_dimension_numbers<[1], [0], [0], [1], [0, 0, 1, 1], [], []>} : vector<8x128xbf16>, vector<128x128xbf16>, vector<8x128xf32> -> vector<8x128xf32>
    %c0_15 = arith.constant 0 : index
    %c0_16 = arith.constant 0 : index
    %25 = vector.load %arg6[%c0_15, %c0_16] : memref<1x128xf32, #tpu.memory_space<vmem>>, vector<1x128xf32>
    %26 = vector.broadcast %25 : vector<1x128xf32> to vector<8x128xf32>
    %27 = arith.addf %24, %26 : vector<8x128xf32>
    %c0_17 = arith.constant 0 : index
    %c0_18 = arith.constant 0 : index
    %28 = vector.load %arg7[%c0_17, %c0_18] : memref<8x128xf32, #tpu.memory_space<vmem>>, vector<8x128xf32>
    tpu.vector_store %arg7[%c0_17, %c0_18], %27 {strides = array<i32>} : memref<8x128xf32, #tpu.memory_space<vmem>>, vector<8x128xf32>,
    return
  }
  func.func @transform_0(%arg0: i32) -> (i32, i32) {
    %c0_i32 = arith.constant 0 : i32
    %c0_i32_0 = arith.constant 0 : i32
    return %arg0, %c0_i32 : i32, i32
  }
  func.func @transform_1(%arg0: i32) -> (i32, i32) {
    %c0_i32 = arith.constant 0 : i32
    %c0_i32_0 = arith.constant 0 : i32
    %c0_i32_1 = arith.constant 0 : i32
    return %c0_i32, %c0_i32_0 : i32, i32
  }
  func.func @transform_2(%arg0: i32) -> (i32, i32) {
    %c0_i32 = arith.constant 0 : i32
    %c0_i32_0 = arith.constant 0 : i32
    %c0_i32_1 = arith.constant 0 : i32
    return %c0_i32, %c0_i32_0 : i32, i32
  }
  func.func @transform_3(%arg0: i32) -> (i32, i32) {
    %c0_i32 = arith.constant 0 : i32
    %c0_i32_0 = arith.constant 0 : i32
    %c0_i32_1 = arith.constant 0 : i32
    return %c0_i32, %c0_i32_0 : i32, i32
  }
  func.func @transform_4(%arg0: i32) -> (i32, i32) {
    %c0_i32 = arith.constant 0 : i32
    %c0_i32_0 = arith.constant 0 : i32
    %c0_i32_1 = arith.constant 0 : i32
    return %c0_i32, %c0_i32_0 : i32, i32
  }
  func.func @transform_5(%arg0: i32) -> (i32, i32) {
    %c0_i32 = arith.constant 0 : i32
    %c0_i32_0 = arith.constant 0 : i32
    %c0_i32_1 = arith.constant 0 : i32
    return %c0_i32, %c0_i32_0 : i32, i32
  }
  func.func @transform_6(%arg0: i32) -> (i32, i32) {
    %c0_i32 = arith.constant 0 : i32
    %c0_i32_0 = arith.constant 0 : i32
    return %arg0, %c0_i32 : i32, i32
  }
}

</mosaic_0001>

<llo_original>
// kernel: tpu_custom_call.1
$region0: #{tpu_custom_call.1}
  #allocation0 [shape = 'u32[]', space=smem, size = 0x4, offset = 0x4, fixed_abs, tag = 'smem constant byte address 0x4 - core index']
  #allocation1 [shape = 'u32[144,128]{1,0:T(1,128)}', space=vmem, size = 0x12000, scoped, tag = 'internal scratch']
  %s0 = inlined_call_operand.hbm [shape: f32[8,784], index: 0, kind: input, shape index: {}]
  %s1 = inlined_call_operand.hbm [shape: bf16[784,128], index: 1, kind: input, shape index: {}]
  %s2 = inlined_call_operand.hbm [shape: bf16[784,128], index: 2, kind: input, shape index: {}]
  %s3 = inlined_call_operand.vmem [shape: f32[1,128], index: 3, kind: input, shape index: {}]
  %s4 = inlined_call_operand.hbm [shape: bf16[128,128], index: 4, kind: input, shape index: {}]
  %s5 = inlined_call_operand.vmem [shape: f32[1,128], index: 5, kind: input, shape index: {}]
  %s6 = inlined_call_operand.hbm [shape: f32[8,128], index: 6, kind: output, shape index: {}]
  %s7 = sld [smem:[#allocation0]]
  $region50: #{tpu_custom_call.1} parent=0
    _
  %s9 = ssub.s32 1, %s7
  %s10 = scalar_select 0, %s9, %s7
  $region1: #{tpu_custom_call.1} parent=0
    #allocation2 [shape = 'u8[28672]{0}', space=vmem, size = 0x7000, scoped, tag = 'input window, operand 0, single buffered']
    #allocation3 [shape = 's32[1]{0}', space=sflag, size = 0x4, scoped, tag = 'scoped memory for tpu_custom_call.1']
    #allocation4 [shape = 's32[1]{0}', space=sflag, size = 0x4, scoped, tag = 'scoped memory for tpu_custom_call.1']
    #allocation5 [shape = 'u8[200704]{0}', space=vmem, size = 0x31000, scoped, tag = 'input window, operand 1, single buffered']
    #allocation6 [shape = 's32[1]{0}', space=sflag, size = 0x4, scoped, tag = 'scoped memory for tpu_custom_call.1']
    #allocation7 [shape = 'u8[200704]{0}', space=vmem, size = 0x31000, scoped, tag = 'input window, operand 2, single buffered']
    #allocation8 [shape = 'u8[32768]{0}', space=vmem, size = 0x8000, scoped, tag = 'input window, operand 4, single buffered']
    #allocation9 [shape = 's32[1]{0}', space=sflag, size = 0x4, scoped, tag = 'scoped memory for tpu_custom_call.1']
    #allocation10 [shape = 'u8[4096]{0}', space=vmem, size = 0x1000, scoped, tag = 'output window, operand 0, single buffered']
    %11 = vsyncpa [#allocation3], 0
    %12 = vsyncpa [#allocation6], 0
    %13 = vsyncpa [#allocation9], 0
    %14 = vsyncpa [#allocation4], 0
    // Predicated region
    $region2: #{tpu_custom_call.1} parent=1 // pred_check
      _
    $region3: #{tpu_custom_call.1} parent=1 // pred_check_branch
      %16 = sbr.rel (0) target = $region5
    $region4: #{tpu_custom_call.1} parent=1 // pred_region
      %s18 = ssub.s32 896, 896
      %19 = vsyncadd [#allocation3], %s18
      %s21 = sshll.u32 [#allocation2], 4
      %s22 = int_to_ptr.vmem [resolvable:$true] %s21
      %24 = dma.hbm_to_vmem [thread:$0]  %s0, 896, %s22, [#allocation3]
    $region5: #{tpu_custom_call.1} parent=1 // pred_fallthru
      _
    // Predicated region
    $region6: #{tpu_custom_call.1} parent=1 // pred_check
      _
    $region7: #{tpu_custom_call.1} parent=1 // pred_check_branch
      %26 = sbr.rel (0) target = $region9
    $region8: #{tpu_custom_call.1} parent=1 // pred_region
      %s28 = ssub.s32 6272, 6272
      %29 = vsyncadd [#allocation6], %s28
      %s30 = sshll.u32 [#allocation5], 4
      %s31 = int_to_ptr.vmem [resolvable:$true] %s30
      %36 = dma.hbm_to_vmem [thread:$0]  %s1, 6272, %s31, [#allocation6], 64, 64, 4
    $region9: #{tpu_custom_call.1} parent=1 // pred_fallthru
      _
    // Predicated region
    $region10: #{tpu_custom_call.1} parent=1 // pred_check
      _
    $region11: #{tpu_custom_call.1} parent=1 // pred_check_branch
      %38 = sbr.rel (0) target = $region13
    $region12: #{tpu_custom_call.1} parent=1 // pred_region
      %s40 = ssub.s32 6272, 6272
      %41 = vsyncadd [#allocation6], %s40
      %s42 = sshll.u32 [#allocation7], 4
      %s43 = int_to_ptr.vmem [resolvable:$true] %s42
      %48 = dma.hbm_to_vmem [thread:$0]  %s2, 6272, %s43, [#allocation6], 64, 64, 4
    $region13: #{tpu_custom_call.1} parent=1 // pred_fallthru
      _
    // Predicated region
    $region14: #{tpu_custom_call.1} parent=1 // pred_check
      _
    $region15: #{tpu_custom_call.1} parent=1 // pred_check_branch
      %50 = sbr.rel (0) target = $region17
    $region16: #{tpu_custom_call.1} parent=1 // pred_region
      _
    $region17: #{tpu_custom_call.1} parent=1 // pred_fallthru
      _
    // Predicated region
    $region18: #{tpu_custom_call.1} parent=1 // pred_check
      _
    $region19: #{tpu_custom_call.1} parent=1 // pred_check_branch
      %52 = sbr.rel (0) target = $region21
    $region20: #{tpu_custom_call.1} parent=1 // pred_region
      %s54 = ssub.s32 1024, 1024
      %55 = vsyncadd [#allocation9], %s54
      %s56 = sshll.u32 [#allocation8], 4
      %s57 = int_to_ptr.vmem [resolvable:$true] %s56
      %62 = dma.hbm_to_vmem [thread:$0]  %s4, 1024, %s57, [#allocation9], 64, 64, 4
    $region21: #{tpu_custom_call.1} parent=1 // pred_fallthru
      _
    // Predicated region
    $region22: #{tpu_custom_call.1} parent=1 // pred_check
      _
    $region23: #{tpu_custom_call.1} parent=1 // pred_check_branch
      %64 = sbr.rel (0) target = $region25
    $region24: #{tpu_custom_call.1} parent=1 // pred_region
      _
    $region25: #{tpu_custom_call.1} parent=1 // pred_fallthru
      _
    // Predicated region
    $region26: #{tpu_custom_call.1} parent=1 // pred_check
      _
    $region27: #{tpu_custom_call.1} parent=1 // pred_check_branch
      %66 = sbr.rel (0) target = $region29
    $region28: #{tpu_custom_call.1} parent=1 // pred_region
      %67 = dma.done [#allocation3], 896
    $region29: #{tpu_custom_call.1} parent=1 // pred_fallthru
      _
    // Predicated region
    $region30: #{tpu_custom_call.1} parent=1 // pred_check
      _
    $region31: #{tpu_custom_call.1} parent=1 // pred_check_branch
      %69 = sbr.rel (0) target = $region33
    $region32: #{tpu_custom_call.1} parent=1 // pred_region
      %70 = dma.done [#allocation6], 6272
    $region33: #{tpu_custom_call.1} parent=1 // pred_fallthru
      _
    // Predicated region
    $region34: #{tpu_custom_call.1} parent=1 // pred_check
      _
    $region35: #{tpu_custom_call.1} parent=1 // pred_check_branch
      %72 = sbr.rel (0) target = $region37
    $region36: #{tpu_custom_call.1} parent=1 // pred_region
      %73 = dma.done [#allocation6], 6272
    $region37: #{tpu_custom_call.1} parent=1 // pred_fallthru
      _
    // Predicated region
    $region38: #{tpu_custom_call.1} parent=1 // pred_check
      _
    $region39: #{tpu_custom_call.1} parent=1 // pred_check_branch
      %75 = sbr.rel (0) target = $region41
    $region40: #{tpu_custom_call.1} parent=1 // pred_region
      %76 = dma.done [#allocation9], 1024
    $region41: #{tpu_custom_call.1} parent=1 // pred_fallthru
      _
    %v78 = vld [vmem:[#allocation2] sm:$0xff]
    %v79 = vld [vmem:[#allocation2 + $0x8] sm:$0xff]
    %v80 = vld [vmem:[#allocation2 + $0x10] sm:$0xff]
    %v81 = vld [vmem:[#allocation2 + $0x18] sm:$0xff]
    %v82 = vld [vmem:[#allocation2 + $0x20] sm:$0xff]
    %v83 = vld [vmem:[#allocation2 + $0x28] sm:$0xff]
    %v84 = vld [vmem:[#allocation2 + $0x30] sm:$0xff]
    %v85 = vpack.c.bf16 %v78, %v78
    %v86 = vpack.c.bf16 %v79, %v79
    %v87 = vpack.c.bf16 %v80, %v80
    %v88 = vpack.c.bf16 %v81, %v81
    %v89 = vpack.c.bf16 %v82, %v82
    %v90 = vpack.c.bf16 %v83, %v83
    %v91 = vpack.c.bf16 %v84, %v84
    %v92 = vld [vmem:[#allocation5] sm:$0xf]
    %v93 = vld [vmem:[#allocation5 + $0x4] sm:$0xf]
    %v94 = vld [vmem:[#allocation5 + $0x8] sm:$0xf]
    %v95 = vld [vmem:[#allocation5 + $0xc] sm:$0xf]
    %v96 = vld [vmem:[#allocation5 + $0x10] sm:$0xf]
    %v97 = vld [vmem:[#allocation5 + $0x14] sm:$0xf]
    %v98 = vld [vmem:[#allocation5 + $0x18] sm:$0xf]
    %v99 = vld [vmem:[#allocation5 + $0x1c] sm:$0xf]
    %v100 = vld [vmem:[#allocation5 + $0x20] sm:$0xf]
    %v101 = vld [vmem:[#allocation5 + $0x24] sm:$0xf]
    %v102 = vld [vmem:[#allocation5 + $0x28] sm:$0xf]
    %v103 = vld [vmem:[#allocation5 + $0x2c] sm:$0xf]
    %v104 = vld [vmem:[#allocation5 + $0x30] sm:$0xf]
    %v105 = vld [vmem:[#allocation5 + $0x34] sm:$0xf]
    %v106 = vld [vmem:[#allocation5 + $0x38] sm:$0xf]
    %v107 = vld [vmem:[#allocation5 + $0x3c] sm:$0xf]
    %v108 = vld [vmem:[#allocation5 + $0x40] sm:$0xf]
    %v109 = vld [vmem:[#allocation5 + $0x44] sm:$0xf]
    %v110 = vld [vmem:[#allocation5 + $0x48] sm:$0xf]
    %v111 = vld [vmem:[#allocation5 + $0x4c] sm:$0xf]
    %v112 = vld [vmem:[#allocation5 + $0x50] sm:$0xf]
    %v113 = vld [vmem:[#allocation5 + $0x54] sm:$0xf]
    %v114 = vld [vmem:[#allocation5 + $0x58] sm:$0xf]
    %v115 = vld [vmem:[#allocation5 + $0x5c] sm:$0xf]
    %v116 = vld [vmem:[#allocation5 + $0x60] sm:$0xf]
    %v117 = vld [vmem:[#allocation5 + $0x64] sm:$0xf]
    %v118 = vld [vmem:[#allocation5 + $0x68] sm:$0xf]
    %v119 = vld [vmem:[#allocation5 + $0x6c] sm:$0xf]
    %v120 = vld [vmem:[#allocation5 + $0x70] sm:$0xf]
    %v121 = vld [vmem:[#allocation5 + $0x74] sm:$0xf]
    %v122 = vld [vmem:[#allocation5 + $0x78] sm:$0xf]
    %v123 = vld [vmem:[#allocation5 + $0x7c] sm:$0xf]
    %v124 = vld [vmem:[#allocation5 + $0x80] sm:$0xf]
    %v125 = vld [vmem:[#allocation5 + $0x84] sm:$0xf]
    %v126 = vld [vmem:[#allocation5 + $0x88] sm:$0xf]
    %v127 = vld [vmem:[#allocation5 + $0x8c] sm:$0xf]
    %v128 = vld [vmem:[#allocation5 + $0x90] sm:$0xf]
    %v129 = vld [vmem:[#allocation5 + $0x94] sm:$0xf]
    %v130 = vld [vmem:[#allocation5 + $0x98] sm:$0xf]
    %v131 = vld [vmem:[#allocation5 + $0x9c] sm:$0xf]
    %v132 = vld [vmem:[#allocation5 + $0xa0] sm:$0xf]
    %v133 = vld [vmem:[#allocation5 + $0xa4] sm:$0xf]
    %v134 = vld [vmem:[#allocation5 + $0xa8] sm:$0xf]
    %v135 = vld [vmem:[#allocation5 + $0xac] sm:$0xf]
    %v136 = vld [vmem:[#allocation5 + $0xb0] sm:$0xf]
    %v137 = vld [vmem:[#allocation5 + $0xb4] sm:$0xf]
    %v138 = vld [vmem:[#allocation5 + $0xb8] sm:$0xf]
    %v139 = vld [vmem:[#allocation5 + $0xbc] sm:$0xf]
    %v140 = vld [vmem:[#allocation5 + $0xc0] sm:$0xf]
    %v141 = vld [vmem:[#allocation5 + $0xc4] sm:$0xf]
    %v142 = vld [vmem:[#allocation5 + $0xc8] sm:$0xf]
    %v143 = vld [vmem:[#allocation5 + $0xcc] sm:$0xf]
    %v144 = vld [vmem:[#allocation5 + $0xd0] sm:$0xf]
    %v145 = vld [vmem:[#allocation5 + $0xd4] sm:$0xf]
    %v146 = vld [vmem:[#allocation5 + $0xd8] sm:$0xf]
    %v147 = vld [vmem:[#allocation5 + $0xdc] sm:$0xf]
    %v148 = vld [vmem:[#allocation5 + $0xe0] sm:$0xf]
    %v149 = vld [vmem:[#allocation5 + $0xe4] sm:$0xf]
    %v150 = vld [vmem:[#allocation5 + $0xe8] sm:$0xf]
    %v151 = vld [vmem:[#allocation5 + $0xec] sm:$0xf]
    %v152 = vld [vmem:[#allocation5 + $0xf0] sm:$0xf]
    %v153 = vld [vmem:[#allocation5 + $0xf4] sm:$0xf]
    %v154 = vld [vmem:[#allocation5 + $0xf8] sm:$0xf]
    %v155 = vld [vmem:[#allocation5 + $0xfc] sm:$0xf]
    %v156 = vld [vmem:[#allocation5 + $0x100] sm:$0xf]
    %v157 = vld [vmem:[#allocation5 + $0x104] sm:$0xf]
    %v158 = vld [vmem:[#allocation5 + $0x108] sm:$0xf]
    %v159 = vld [vmem:[#allocation5 + $0x10c] sm:$0xf]
    %v160 = vld [vmem:[#allocation5 + $0x110] sm:$0xf]
    %v161 = vld [vmem:[#allocation5 + $0x114] sm:$0xf]
    %v162 = vld [vmem:[#allocation5 + $0x118] sm:$0xf]
    %v163 = vld [vmem:[#allocation5 + $0x11c] sm:$0xf]
    %v164 = vld [vmem:[#allocation5 + $0x120] sm:$0xf]
    %v165 = vld [vmem:[#allocation5 + $0x124] sm:$0xf]
    %v166 = vld [vmem:[#allocation5 + $0x128] sm:$0xf]
    %v167 = vld [vmem:[#allocation5 + $0x12c] sm:$0xf]
    %v168 = vld [vmem:[#allocation5 + $0x130] sm:$0xf]
    %v169 = vld [vmem:[#allocation5 + $0x134] sm:$0xf]
    %v170 = vld [vmem:[#allocation5 + $0x138] sm:$0xf]
    %v171 = vld [vmem:[#allocation5 + $0x13c] sm:$0xf]
    %v172 = vld [vmem:[#allocation5 + $0x140] sm:$0xf]
    %v173 = vld [vmem:[#allocation5 + $0x144] sm:$0xf]
    %v174 = vld [vmem:[#allocation5 + $0x148] sm:$0xf]
    %v175 = vld [vmem:[#allocation5 + $0x14c] sm:$0xf]
    %v176 = vld [vmem:[#allocation5 + $0x150] sm:$0xf]
    %v177 = vld [vmem:[#allocation5 + $0x154] sm:$0xf]
    %v178 = vld [vmem:[#allocation5 + $0x158] sm:$0xf]
    %v179 = vld [vmem:[#allocation5 + $0x15c] sm:$0xf]
    %v180 = vld [vmem:[#allocation5 + $0x160] sm:$0xf]
    %v181 = vld [vmem:[#allocation5 + $0x164] sm:$0xf]
    %v182 = vld [vmem:[#allocation5 + $0x168] sm:$0xf]
    %v183 = vld [vmem:[#allocation5 + $0x16c] sm:$0xf]
    %v184 = vld [vmem:[#allocation5 + $0x170] sm:$0xf]
    %v185 = vld [vmem:[#allocation5 + $0x174] sm:$0xf]
    %v186 = vld [vmem:[#allocation5 + $0x178] sm:$0xf]
    %v187 = vld [vmem:[#allocation5 + $0x17c] sm:$0xf]
    %v188 = vld [vmem:[#allocation5 + $0x180] sm:$0xf]
    %v189 = vld [vmem:[#allocation5 + $0x184] sm:$0xf]
    %v190 = vld [vmem:[%s3] sm:$0x1]
    %v192 = vlaneseq
    %v193 = vshrl.u32 %v192, 7
    %v194 = vsub.s32 0, %v193
    %v195 = vrot.slane %v190, %v194
    %v295 = vunpack.c.l.b16 %v92
    %v296 = vunpack.c.l.b16 %v93
    %v297 = vunpack.c.l.b16 %v94
    %v298 = vunpack.c.l.b16 %v95
    %v299 = vunpack.c.l.b16 %v96
    %v300 = vunpack.c.l.b16 %v97
    %v301 = vunpack.c.l.b16 %v98
    %v302 = vunpack.c.l.b16 %v99
    %v303 = vunpack.c.l.b16 %v100
    %v304 = vunpack.c.l.b16 %v101
    %v305 = vunpack.c.l.b16 %v102
    %v306 = vunpack.c.l.b16 %v103
    %v307 = vunpack.c.l.b16 %v104
    %v308 = vunpack.c.l.b16 %v105
    %v309 = vunpack.c.l.b16 %v106
    %v310 = vunpack.c.l.b16 %v107
    %v311 = vunpack.c.l.b16 %v108
    %v312 = vunpack.c.l.b16 %v109
    %v313 = vunpack.c.l.b16 %v110
    %v314 = vunpack.c.l.b16 %v111
    %v315 = vunpack.c.l.b16 %v112
    %v316 = vunpack.c.l.b16 %v113
    %v317 = vunpack.c.l.b16 %v114
    %v318 = vunpack.c.l.b16 %v115
    %v319 = vunpack.c.l.b16 %v116
    %v320 = vunpack.c.l.b16 %v117
    %v321 = vunpack.c.l.b16 %v118
    %v322 = vunpack.c.l.b16 %v119
    %v323 = vunpack.c.l.b16 %v120
    %v324 = vunpack.c.l.b16 %v121
    %v325 = vunpack.c.l.b16 %v122
    %v326 = vunpack.c.l.b16 %v123
    %v327 = vunpack.c.l.b16 %v124
    %v328 = vunpack.c.l.b16 %v125
    %v329 = vunpack.c.l.b16 %v126
    %v330 = vunpack.c.l.b16 %v127
    %v331 = vunpack.c.l.b16 %v128
    %v332 = vunpack.c.l.b16 %v129
    %v333 = vunpack.c.l.b16 %v130
    %v334 = vunpack.c.l.b16 %v131
    %v335 = vunpack.c.l.b16 %v132
    %v336 = vunpack.c.l.b16 %v133
    %v337 = vunpack.c.l.b16 %v134
    %v338 = vunpack.c.l.b16 %v135
    %v339 = vunpack.c.l.b16 %v136
    %v340 = vunpack.c.l.b16 %v137
    %v341 = vunpack.c.l.b16 %v138
    %v342 = vunpack.c.l.b16 %v139
    %v343 = vunpack.c.l.b16 %v140
    %v344 = vunpack.c.l.b16 %v141
    %v345 = vunpack.c.l.b16 %v142
    %v346 = vunpack.c.l.b16 %v143
    %v347 = vunpack.c.l.b16 %v144
    %v348 = vunpack.c.l.b16 %v145
    %v349 = vunpack.c.l.b16 %v146
    %v350 = vunpack.c.l.b16 %v147
    %v351 = vunpack.c.l.b16 %v148
    %v352 = vunpack.c.l.b16 %v149
    %v353 = vunpack.c.l.b16 %v150
    %v354 = vunpack.c.l.b16 %v151
    %v355 = vunpack.c.l.b16 %v152
    %v356 = vunpack.c.l.b16 %v153
    %v357 = vunpack.c.l.b16 %v154
    %v358 = vunpack.c.l.b16 %v155
    %v359 = vunpack.c.l.b16 %v156
    %v360 = vunpack.c.l.b16 %v157
    %v361 = vunpack.c.l.b16 %v158
    %v362 = vunpack.c.l.b16 %v159
    %v363 = vunpack.c.l.b16 %v160
    %v364 = vunpack.c.l.b16 %v161
    %v365 = vunpack.c.l.b16 %v162
    %v366 = vunpack.c.l.b16 %v163
    %v367 = vunpack.c.l.b16 %v164
    %v368 = vunpack.c.l.b16 %v165
    %v369 = vunpack.c.l.b16 %v166
    %v370 = vunpack.c.l.b16 %v167
    %v371 = vunpack.c.l.b16 %v168
    %v372 = vunpack.c.l.b16 %v169
    %v373 = vunpack.c.l.b16 %v170
    %v374 = vunpack.c.l.b16 %v171
    %v375 = vunpack.c.l.b16 %v172
    %v376 = vunpack.c.l.b16 %v173
    %v377 = vunpack.c.l.b16 %v174
    %v378 = vunpack.c.l.b16 %v175
    %v379 = vunpack.c.l.b16 %v176
    %v380 = vunpack.c.l.b16 %v177
    %v381 = vunpack.c.l.b16 %v178
    %v382 = vunpack.c.l.b16 %v179
    %v383 = vunpack.c.l.b16 %v180
    %v384 = vunpack.c.l.b16 %v181
    %v385 = vunpack.c.l.b16 %v182
    %v386 = vunpack.c.l.b16 %v183
    %v387 = vunpack.c.l.b16 %v184
    %v388 = vunpack.c.l.b16 %v185
    %v389 = vunpack.c.l.b16 %v186
    %v390 = vunpack.c.l.b16 %v187
    %v391 = vunpack.c.l.b16 %v188
    %v392 = vunpack.c.l.b16 %v189
    %v393 = vpack.c.b16 %v296, %v295
    %v394 = vpack.c.b16 %v298, %v297
    %v395 = vpack.c.b16 %v300, %v299
    %v396 = vpack.c.b16 %v302, %v301
    %v397 = vpack.c.b16 %v304, %v303
    %v398 = vpack.c.b16 %v306, %v305
    %v399 = vpack.c.b16 %v308, %v307
    %v400 = vpack.c.b16 %v310, %v309
    %v401 = vpack.c.b16 %v312, %v311
    %v402 = vpack.c.b16 %v314, %v313
    %v403 = vpack.c.b16 %v316, %v315
    %v404 = vpack.c.b16 %v318, %v317
    %v405 = vpack.c.b16 %v320, %v319
    %v406 = vpack.c.b16 %v322, %v321
    %v407 = vpack.c.b16 %v324, %v323
    %v408 = vpack.c.b16 %v326, %v325
    %v409 = vpack.c.b16 %v328, %v327
    %v410 = vpack.c.b16 %v330, %v329
    %v411 = vpack.c.b16 %v332, %v331
    %v412 = vpack.c.b16 %v334, %v333
    %v413 = vpack.c.b16 %v336, %v335
    %v414 = vpack.c.b16 %v338, %v337
    %v415 = vpack.c.b16 %v340, %v339
    %v416 = vpack.c.b16 %v342, %v341
    %v417 = vpack.c.b16 %v344, %v343
    %v418 = vpack.c.b16 %v346, %v345
    %v419 = vpack.c.b16 %v348, %v347
    %v420 = vpack.c.b16 %v350, %v349
    %v421 = vpack.c.b16 %v352, %v351
    %v422 = vpack.c.b16 %v354, %v353
    %v423 = vpack.c.b16 %v356, %v355
    %v424 = vpack.c.b16 %v358, %v357
    %v425 = vpack.c.b16 %v360, %v359
    %v426 = vpack.c.b16 %v362, %v361
    %v427 = vpack.c.b16 %v364, %v363
    %v428 = vpack.c.b16 %v366, %v365
    %v429 = vpack.c.b16 %v368, %v367
    %v430 = vpack.c.b16 %v370, %v369
    %v431 = vpack.c.b16 %v372, %v371
    %v432 = vpack.c.b16 %v374, %v373
    %v433 = vpack.c.b16 %v376, %v375
    %v434 = vpack.c.b16 %v378, %v377
    %v435 = vpack.c.b16 %v380, %v379
    %v436 = vpack.c.b16 %v382, %v381
    %v437 = vpack.c.b16 %v384, %v383
    %v438 = vpack.c.b16 %v386, %v385
    %v439 = vpack.c.b16 %v388, %v387
    %v440 = vpack.c.b16 %v390, %v389
    %v441 = vpack.c.b16 %v392, %v391
    %vm491 = vcmask 130048
    %v493 = vsel %vm491, %v91, 0
    %495 = vmatprep.subr.bf16.mxu0 0
    %496 = vmatpush1.bf16.msra.mxu0 %v393
    %497 = vmatprep.subr.bf16.mxu0 0
    %498 = vmatpush1.bf16.msra.mxu0 %v394
    %499 = vmatprep.subr.bf16.mxu0 0
    %500 = vmatpush1.bf16.msra.mxu0 %v395
    %501 = vmatprep.subr.bf16.mxu0 0
    %502 = vmatpush1.bf16.msra.mxu0 %v396
    %503 = vmatprep.subr.bf16.mxu0 0
    %504 = vmatpush1.bf16.msra.mxu0 %v397
    %505 = vmatprep.subr.bf16.mxu0 0
    %506 = vmatpush1.bf16.msra.mxu0 %v398
    %507 = vmatprep.subr.bf16.mxu0 0
    %508 = vmatpush1.bf16.msra.mxu0 %v399
    %509 = vmatprep.subr.bf16.mxu0 0
    %510 = vmatpush1.bf16.msra.mxu0 %v400
    %511 = vmatprep.subr.bf16.mxu0 0
    %512 = vmatpush1.bf16.msra.mxu0 %v401
    %513 = vmatprep.subr.bf16.mxu0 0
    %514 = vmatpush1.bf16.msra.mxu0 %v402
    %515 = vmatprep.subr.bf16.mxu0 0
    %516 = vmatpush1.bf16.msra.mxu0 %v403
    %517 = vmatprep.subr.bf16.mxu0 0
    %518 = vmatpush1.bf16.msra.mxu0 %v404
    %519 = vmatprep.subr.bf16.mxu0 0
    %520 = vmatpush1.bf16.msra.mxu0 %v405
    %521 = vmatprep.subr.bf16.mxu0 0
    %522 = vmatpush1.bf16.msra.mxu0 %v406
    %523 = vmatprep.subr.bf16.mxu0 0
    %524 = vmatpush1.bf16.msra.mxu0 %v407
    %525 = vmatprep.subr.bf16.mxu0 0
    %526 = vmatpush1.bf16.msra.mxu0 %v408
    %527 = vmatprep.mubr.bf16.mxu0 %v86
    %528 = vmatmul.mubr.bf16.gmra.mrb[0].mxu0 %v85
    %v529 = vpop.f32.mrb[0].mxu0
    %v530 = vadd.f32 %v195, %v529
    %v531 = vpop.f32.mrb[0].mxu0
    %v532 = vpop.f32.mrb[0].mxu0
    %v533 = vpop.f32.mrb[0].mxu0
    %534 = vdwg.mxu0
    %535 = vmatprep.subr.bf16.mxu0 0
    %536 = vmatpush1.bf16.msra.mxu0 %v409
    %537 = vmatprep.subr.bf16.mxu0 0
    %538 = vmatpush1.bf16.msra.mxu0 %v410
    %539 = vmatprep.subr.bf16.mxu0 0
    %540 = vmatpush1.bf16.msra.mxu0 %v411
    %541 = vmatprep.subr.bf16.mxu0 0
    %542 = vmatpush1.bf16.msra.mxu0 %v412
    %543 = vmatprep.subr.bf16.mxu0 0
    %544 = vmatpush1.bf16.msra.mxu0 %v413
    %545 = vmatprep.subr.bf16.mxu0 0
    %546 = vmatpush1.bf16.msra.mxu0 %v414
    %547 = vmatprep.subr.bf16.mxu0 0
    %548 = vmatpush1.bf16.msra.mxu0 %v415
    %549 = vmatprep.subr.bf16.mxu0 0
    %550 = vmatpush1.bf16.msra.mxu0 %v416
    %551 = vmatprep.subr.bf16.mxu0 0
    %552 = vmatpush1.bf16.msra.mxu0 %v417
    %553 = vmatprep.subr.bf16.mxu0 0
    %554 = vmatpush1.bf16.msra.mxu0 %v418
    %555 = vmatprep.subr.bf16.mxu0 0
    %556 = vmatpush1.bf16.msra.mxu0 %v419
    %557 = vmatprep.subr.bf16.mxu0 0
    %558 = vmatpush1.bf16.msra.mxu0 %v420
    %559 = vmatprep.subr.bf16.mxu0 0
    %560 = vmatpush1.bf16.msra.mxu0 %v421
    %561 = vmatprep.subr.bf16.mxu0 0
    %562 = vmatpush1.bf16.msra.mxu0 %v422
    %563 = vmatprep.subr.bf16.mxu0 0
    %564 = vmatpush1.bf16.msra.mxu0 %v423
    %565 = vmatprep.subr.bf16.mxu0 0
    %566 = vmatpush1.bf16.msra.mxu0 %v424
    %567 = vmatprep.mubr.bf16.mxu0 %v88
    %568 = vmatmul.mubr.bf16.gmra.mrb[0].mxu0 %v87
    %v569 = vpop.f32.mrb[0].mxu0
    %v570 = vadd.f32 %v530, %v569
    %v571 = vpop.f32.mrb[0].mxu0
    %v572 = vpop.f32.mrb[0].mxu0
    %v573 = vpop.f32.mrb[0].mxu0
    %574 = vdwg.mxu0
    %575 = vmatprep.subr.bf16.mxu0 0
    %576 = vmatpush1.bf16.msra.mxu0 %v425
    %577 = vmatprep.subr.bf16.mxu0 0
    %578 = vmatpush1.bf16.msra.mxu0 %v426
    %579 = vmatprep.subr.bf16.mxu0 0
    %580 = vmatpush1.bf16.msra.mxu0 %v427
    %581 = vmatprep.subr.bf16.mxu0 0
    %582 = vmatpush1.bf16.msra.mxu0 %v428
    %583 = vmatprep.subr.bf16.mxu0 0
    %584 = vmatpush1.bf16.msra.mxu0 %v429
    %585 = vmatprep.subr.bf16.mxu0 0
    %586 = vmatpush1.bf16.msra.mxu0 %v430
    %587 = vmatprep.subr.bf16.mxu0 0
    %588 = vmatpush1.bf16.msra.mxu0 %v431
    %589 = vmatprep.subr.bf16.mxu0 0
    %590 = vmatpush1.bf16.msra.mxu0 %v432
    %591 = vmatprep.subr.bf16.mxu0 0
    %592 = vmatpush1.bf16.msra.mxu0 %v433
    %593 = vmatprep.subr.bf16.mxu0 0
    %594 = vmatpush1.bf16.msra.mxu0 %v434
    %595 = vmatprep.subr.bf16.mxu0 0
    %596 = vmatpush1.bf16.msra.mxu0 %v435
    %597 = vmatprep.subr.bf16.mxu0 0
    %598 = vmatpush1.bf16.msra.mxu0 %v436
    %599 = vmatprep.subr.bf16.mxu0 0
    %600 = vmatpush1.bf16.msra.mxu0 %v437
    %601 = vmatprep.subr.bf16.mxu0 0
    %602 = vmatpush1.bf16.msra.mxu0 %v438
    %603 = vmatprep.subr.bf16.mxu0 0
    %604 = vmatpush1.bf16.msra.mxu0 %v439
    %605 = vmatprep.subr.bf16.mxu0 0
    %606 = vmatpush1.bf16.msra.mxu0 %v440
    %607 = vmatprep.mubr.bf16.mxu0 %v90
    %608 = vmatmul.mubr.bf16.gmra.mrb[0].mxu0 %v89
    %v609 = vpop.f32.mrb[0].mxu0
    %v610 = vadd.f32 %v570, %v609
    %v611 = vpop.f32.mrb[0].mxu0
    %v612 = vpop.f32.mrb[0].mxu0
    %v613 = vpop.f32.mrb[0].mxu0
    %614 = vdwg.mxu0
    %615 = vmatprep.subr.bf16.mxu0 0
    %616 = vmatpush1.bf16.msra.mxu0 %v441
    %617 = vmatprep.subr.bf16.mxu0 0
    %618 = vmatpush1.bf16.msra.mxu0 0
    %619 = vmatprep.subr.bf16.mxu0 0
    %620 = vmatpush1.bf16.msra.mxu0 0
    %621 = vmatprep.subr.bf16.mxu0 0
    %622 = vmatpush1.bf16.msra.mxu0 0
    %623 = vmatprep.subr.bf16.mxu0 0
    %624 = vmatpush1.bf16.msra.mxu0 0
    %625 = vmatprep.subr.bf16.mxu0 0
    %626 = vmatpush1.bf16.msra.mxu0 0
    %627 = vmatprep.subr.bf16.mxu0 0
    %628 = vmatpush1.bf16.msra.mxu0 0
    %629 = vmatprep.subr.bf16.mxu0 0
    %630 = vmatpush1.bf16.msra.mxu0 0
    %631 = vmatprep.subr.bf16.mxu0 0
    %632 = vmatpush1.bf16.msra.mxu0 0
    %633 = vmatprep.subr.bf16.mxu0 0
    %634 = vmatpush1.bf16.msra.mxu0 0
    %635 = vmatprep.subr.bf16.mxu0 0
    %636 = vmatpush1.bf16.msra.mxu0 0
    %637 = vmatprep.subr.bf16.mxu0 0
    %638 = vmatpush1.bf16.msra.mxu0 0
    %639 = vmatprep.subr.bf16.mxu0 0
    %640 = vmatpush1.bf16.msra.mxu0 0
    %641 = vmatprep.subr.bf16.mxu0 0
    %642 = vmatpush1.bf16.msra.mxu0 0
    %643 = vmatprep.subr.bf16.mxu0 0
    %644 = vmatpush1.bf16.msra.mxu0 0
    %645 = vmatprep.subr.bf16.mxu0 0
    %646 = vmatpush1.bf16.msra.mxu0 0
    %647 = vmatprep.mubr.bf16.mxu0 0
    %648 = vmatmul.mubr.bf16.gmra.mrb[0].mxu0 %v493
    %v649 = vpop.f32.mrb[0].mxu0
    %v650 = vadd.f32 %v610, %v649
    %v651 = vpop.f32.mrb[0].mxu0
    %v652 = vpop.f32.mrb[0].mxu0
    %v653 = vpop.f32.mrb[0].mxu0
    %654 = vdwg.mxu0
    %v655 = vmul.bf16 %v85, %v85
    %v656 = vmul.bf16 %v86, %v86
    %v657 = vmul.bf16 %v87, %v87
    %v658 = vmul.bf16 %v88, %v88
    %v659 = vmul.bf16 %v89, %v89
    %v660 = vmul.bf16 %v90, %v90
    %v661 = vmul.bf16 %v91, %v91
    %v662 = vsub.bf16 %v85, %v655
    %v663 = vsub.bf16 %v86, %v656
    %v664 = vsub.bf16 %v87, %v657
    %v665 = vsub.bf16 %v88, %v658
    %v666 = vsub.bf16 %v89, %v659
    %v667 = vsub.bf16 %v90, %v660
    %v668 = vsub.bf16 %v91, %v661
    %v669 = vld [vmem:[#allocation7] sm:$0xf]
    %v670 = vld [vmem:[#allocation7 + $0x4] sm:$0xf]
    %v671 = vld [vmem:[#allocation7 + $0x8] sm:$0xf]
    %v672 = vld [vmem:[#allocation7 + $0xc] sm:$0xf]
    %v673 = vld [vmem:[#allocation7 + $0x10] sm:$0xf]
    %v674 = vld [vmem:[#allocation7 + $0x14] sm:$0xf]
    %v675 = vld [vmem:[#allocation7 + $0x18] sm:$0xf]
    %v676 = vld [vmem:[#allocation7 + $0x1c] sm:$0xf]
    %v677 = vld [vmem:[#allocation7 + $0x20] sm:$0xf]
    %v678 = vld [vmem:[#allocation7 + $0x24] sm:$0xf]
    %v679 = vld [vmem:[#allocation7 + $0x28] sm:$0xf]
    %v680 = vld [vmem:[#allocation7 + $0x2c] sm:$0xf]
    %v681 = vld [vmem:[#allocation7 + $0x30] sm:$0xf]
    %v682 = vld [vmem:[#allocation7 + $0x34] sm:$0xf]
    %v683 = vld [vmem:[#allocation7 + $0x38] sm:$0xf]
    %v684 = vld [vmem:[#allocation7 + $0x3c] sm:$0xf]
    %v685 = vld [vmem:[#allocation7 + $0x40] sm:$0xf]
    %v686 = vld [vmem:[#allocation7 + $0x44] sm:$0xf]
    %v687 = vld [vmem:[#allocation7 + $0x48] sm:$0xf]
    %v688 = vld [vmem:[#allocation7 + $0x4c] sm:$0xf]
    %v689 = vld [vmem:[#allocation7 + $0x50] sm:$0xf]
    %v690 = vld [vmem:[#allocation7 + $0x54] sm:$0xf]
    %v691 = vld [vmem:[#allocation7 + $0x58] sm:$0xf]
    %v692 = vld [vmem:[#allocation7 + $0x5c] sm:$0xf]
    %v693 = vld [vmem:[#allocation7 + $0x60] sm:$0xf]
    %v694 = vld [vmem:[#allocation7 + $0x64] sm:$0xf]
    %v695 = vld [vmem:[#allocation7 + $0x68] sm:$0xf]
    %v696 = vld [vmem:[#allocation7 + $0x6c] sm:$0xf]
    %v697 = vld [vmem:[#allocation7 + $0x70] sm:$0xf]
    %v698 = vld [vmem:[#allocation7 + $0x74] sm:$0xf]
    %v699 = vld [vmem:[#allocation7 + $0x78] sm:$0xf]
    %v700 = vld [vmem:[#allocation7 + $0x7c] sm:$0xf]
    %v701 = vld [vmem:[#allocation7 + $0x80] sm:$0xf]
    %v702 = vld [vmem:[#allocation7 + $0x84] sm:$0xf]
    %v703 = vld [vmem:[#allocation7 + $0x88] sm:$0xf]
    %v704 = vld [vmem:[#allocation7 + $0x8c] sm:$0xf]
    %v705 = vld [vmem:[#allocation7 + $0x90] sm:$0xf]
    %v706 = vld [vmem:[#allocation7 + $0x94] sm:$0xf]
    %v707 = vld [vmem:[#allocation7 + $0x98] sm:$0xf]
    %v708 = vld [vmem:[#allocation7 + $0x9c] sm:$0xf]
    %v709 = vld [vmem:[#allocation7 + $0xa0] sm:$0xf]
    %v710 = vld [vmem:[#allocation7 + $0xa4] sm:$0xf]
    %v711 = vld [vmem:[#allocation7 + $0xa8] sm:$0xf]
    %v712 = vld [vmem:[#allocation7 + $0xac] sm:$0xf]
    %v713 = vld [vmem:[#allocation7 + $0xb0] sm:$0xf]
    %v714 = vld [vmem:[#allocation7 + $0xb4] sm:$0xf]
    %v715 = vld [vmem:[#allocation7 + $0xb8] sm:$0xf]
    %v716 = vld [vmem:[#allocation7 + $0xbc] sm:$0xf]
    %v717 = vld [vmem:[#allocation7 + $0xc0] sm:$0xf]
    %v718 = vld [vmem:[#allocation7 + $0xc4] sm:$0xf]
    %v719 = vld [vmem:[#allocation7 + $0xc8] sm:$0xf]
    %v720 = vld [vmem:[#allocation7 + $0xcc] sm:$0xf]
    %v721 = vld [vmem:[#allocation7 + $0xd0] sm:$0xf]
    %v722 = vld [vmem:[#allocation7 + $0xd4] sm:$0xf]
    %v723 = vld [vmem:[#allocation7 + $0xd8] sm:$0xf]
    %v724 = vld [vmem:[#allocation7 + $0xdc] sm:$0xf]
    %v725 = vld [vmem:[#allocation7 + $0xe0] sm:$0xf]
    %v726 = vld [vmem:[#allocation7 + $0xe4] sm:$0xf]
    %v727 = vld [vmem:[#allocation7 + $0xe8] sm:$0xf]
    %v728 = vld [vmem:[#allocation7 + $0xec] sm:$0xf]
    %v729 = vld [vmem:[#allocation7 + $0xf0] sm:$0xf]
    %v730 = vld [vmem:[#allocation7 + $0xf4] sm:$0xf]
    %v731 = vld [vmem:[#allocation7 + $0xf8] sm:$0xf]
    %v732 = vld [vmem:[#allocation7 + $0xfc] sm:$0xf]
    %v733 = vld [vmem:[#allocation7 + $0x100] sm:$0xf]
    %v734 = vld [vmem:[#allocation7 + $0x104] sm:$0xf]
    %v735 = vld [vmem:[#allocation7 + $0x108] sm:$0xf]
    %v736 = vld [vmem:[#allocation7 + $0x10c] sm:$0xf]
    %v737 = vld [vmem:[#allocation7 + $0x110] sm:$0xf]
    %v738 = vld [vmem:[#allocation7 + $0x114] sm:$0xf]
    %v739 = vld [vmem:[#allocation7 + $0x118] sm:$0xf]
    %v740 = vld [vmem:[#allocation7 + $0x11c] sm:$0xf]
    %v741 = vld [vmem:[#allocation7 + $0x120] sm:$0xf]
    %v742 = vld [vmem:[#allocation7 + $0x124] sm:$0xf]
    %v743 = vld [vmem:[#allocation7 + $0x128] sm:$0xf]
    %v744 = vld [vmem:[#allocation7 + $0x12c] sm:$0xf]
    %v745 = vld [vmem:[#allocation7 + $0x130] sm:$0xf]
    %v746 = vld [vmem:[#allocation7 + $0x134] sm:$0xf]
    %v747 = vld [vmem:[#allocation7 + $0x138] sm:$0xf]
    %v748 = vld [vmem:[#allocation7 + $0x13c] sm:$0xf]
    %v749 = vld [vmem:[#allocation7 + $0x140] sm:$0xf]
    %v750 = vld [vmem:[#allocation7 + $0x144] sm:$0xf]
    %v751 = vld [vmem:[#allocation7 + $0x148] sm:$0xf]
    %v752 = vld [vmem:[#allocation7 + $0x14c] sm:$0xf]
    %v753 = vld [vmem:[#allocation7 + $0x150] sm:$0xf]
    %v754 = vld [vmem:[#allocation7 + $0x154] sm:$0xf]
    %v755 = vld [vmem:[#allocation7 + $0x158] sm:$0xf]
    %v756 = vld [vmem:[#allocation7 + $0x15c] sm:$0xf]
    %v757 = vld [vmem:[#allocation7 + $0x160] sm:$0xf]
    %v758 = vld [vmem:[#allocation7 + $0x164] sm:$0xf]
    %v759 = vld [vmem:[#allocation7 + $0x168] sm:$0xf]
    %v760 = vld [vmem:[#allocation7 + $0x16c] sm:$0xf]
    %v761 = vld [vmem:[#allocation7 + $0x170] sm:$0xf]
    %v762 = vld [vmem:[#allocation7 + $0x174] sm:$0xf]
    %v763 = vld [vmem:[#allocation7 + $0x178] sm:$0xf]
    %v764 = vld [vmem:[#allocation7 + $0x17c] sm:$0xf]
    %v765 = vld [vmem:[#allocation7 + $0x180] sm:$0xf]
    %v766 = vld [vmem:[#allocation7 + $0x184] sm:$0xf]
    %v865 = vunpack.c.l.b16 %v669
    %v866 = vunpack.c.l.b16 %v670
    %v867 = vunpack.c.l.b16 %v671
    %v868 = vunpack.c.l.b16 %v672
    %v869 = vunpack.c.l.b16 %v673
    %v870 = vunpack.c.l.b16 %v674
    %v871 = vunpack.c.l.b16 %v675
    %v872 = vunpack.c.l.b16 %v676
    %v873 = vunpack.c.l.b16 %v677
    %v874 = vunpack.c.l.b16 %v678
    %v875 = vunpack.c.l.b16 %v679
    %v876 = vunpack.c.l.b16 %v680
    %v877 = vunpack.c.l.b16 %v681
    %v878 = vunpack.c.l.b16 %v682
    %v879 = vunpack.c.l.b16 %v683
    %v880 = vunpack.c.l.b16 %v684
    %v881 = vunpack.c.l.b16 %v685
    %v882 = vunpack.c.l.b16 %v686
    %v883 = vunpack.c.l.b16 %v687
    %v884 = vunpack.c.l.b16 %v688
    %v885 = vunpack.c.l.b16 %v689
    %v886 = vunpack.c.l.b16 %v690
    %v887 = vunpack.c.l.b16 %v691
    %v888 = vunpack.c.l.b16 %v692
    %v889 = vunpack.c.l.b16 %v693
    %v890 = vunpack.c.l.b16 %v694
    %v891 = vunpack.c.l.b16 %v695
    %v892 = vunpack.c.l.b16 %v696
    %v893 = vunpack.c.l.b16 %v697
    %v894 = vunpack.c.l.b16 %v698
    %v895 = vunpack.c.l.b16 %v699
    %v896 = vunpack.c.l.b16 %v700
    %v897 = vunpack.c.l.b16 %v701
    %v898 = vunpack.c.l.b16 %v702
    %v899 = vunpack.c.l.b16 %v703
    %v900 = vunpack.c.l.b16 %v704
    %v901 = vunpack.c.l.b16 %v705
    %v902 = vunpack.c.l.b16 %v706
    %v903 = vunpack.c.l.b16 %v707
    %v904 = vunpack.c.l.b16 %v708
    %v905 = vunpack.c.l.b16 %v709
    %v906 = vunpack.c.l.b16 %v710
    %v907 = vunpack.c.l.b16 %v711
    %v908 = vunpack.c.l.b16 %v712
    %v909 = vunpack.c.l.b16 %v713
    %v910 = vunpack.c.l.b16 %v714
    %v911 = vunpack.c.l.b16 %v715
    %v912 = vunpack.c.l.b16 %v716
    %v913 = vunpack.c.l.b16 %v717
    %v914 = vunpack.c.l.b16 %v718
    %v915 = vunpack.c.l.b16 %v719
    %v916 = vunpack.c.l.b16 %v720
    %v917 = vunpack.c.l.b16 %v721
    %v918 = vunpack.c.l.b16 %v722
    %v919 = vunpack.c.l.b16 %v723
    %v920 = vunpack.c.l.b16 %v724
    %v921 = vunpack.c.l.b16 %v725
    %v922 = vunpack.c.l.b16 %v726
    %v923 = vunpack.c.l.b16 %v727
    %v924 = vunpack.c.l.b16 %v728
    %v925 = vunpack.c.l.b16 %v729
    %v926 = vunpack.c.l.b16 %v730
    %v927 = vunpack.c.l.b16 %v731
    %v928 = vunpack.c.l.b16 %v732
    %v929 = vunpack.c.l.b16 %v733
    %v930 = vunpack.c.l.b16 %v734
    %v931 = vunpack.c.l.b16 %v735
    %v932 = vunpack.c.l.b16 %v736
    %v933 = vunpack.c.l.b16 %v737
    %v934 = vunpack.c.l.b16 %v738
    %v935 = vunpack.c.l.b16 %v739
    %v936 = vunpack.c.l.b16 %v740
    %v937 = vunpack.c.l.b16 %v741
    %v938 = vunpack.c.l.b16 %v742
    %v939 = vunpack.c.l.b16 %v743
    %v940 = vunpack.c.l.b16 %v744
    %v941 = vunpack.c.l.b16 %v745
    %v942 = vunpack.c.l.b16 %v746
    %v943 = vunpack.c.l.b16 %v747
    %v944 = vunpack.c.l.b16 %v748
    %v945 = vunpack.c.l.b16 %v749
    %v946 = vunpack.c.l.b16 %v750
    %v947 = vunpack.c.l.b16 %v751
    %v948 = vunpack.c.l.b16 %v752
    %v949 = vunpack.c.l.b16 %v753
    %v950 = vunpack.c.l.b16 %v754
    %v951 = vunpack.c.l.b16 %v755
    %v952 = vunpack.c.l.b16 %v756
    %v953 = vunpack.c.l.b16 %v757
    %v954 = vunpack.c.l.b16 %v758
    %v955 = vunpack.c.l.b16 %v759
    %v956 = vunpack.c.l.b16 %v760
    %v957 = vunpack.c.l.b16 %v761
    %v958 = vunpack.c.l.b16 %v762
    %v959 = vunpack.c.l.b16 %v763
    %v960 = vunpack.c.l.b16 %v764
    %v961 = vunpack.c.l.b16 %v765
    %v962 = vunpack.c.l.b16 %v766
    %v963 = vpack.c.b16 %v866, %v865
    %v964 = vpack.c.b16 %v868, %v867
    %v965 = vpack.c.b16 %v870, %v869
    %v966 = vpack.c.b16 %v872, %v871
    %v967 = vpack.c.b16 %v874, %v873
    %v968 = vpack.c.b16 %v876, %v875
    %v969 = vpack.c.b16 %v878, %v877
    %v970 = vpack.c.b16 %v880, %v879
    %v971 = vpack.c.b16 %v882, %v881
    %v972 = vpack.c.b16 %v884, %v883
    %v973 = vpack.c.b16 %v886, %v885
    %v974 = vpack.c.b16 %v888, %v887
    %v975 = vpack.c.b16 %v890, %v889
    %v976 = vpack.c.b16 %v892, %v891
    %v977 = vpack.c.b16 %v894, %v893
    %v978 = vpack.c.b16 %v896, %v895
    %v979 = vpack.c.b16 %v898, %v897
    %v980 = vpack.c.b16 %v900, %v899
    %v981 = vpack.c.b16 %v902, %v901
    %v982 = vpack.c.b16 %v904, %v903
    %v983 = vpack.c.b16 %v906, %v905
    %v984 = vpack.c.b16 %v908, %v907
    %v985 = vpack.c.b16 %v910, %v909
    %v986 = vpack.c.b16 %v912, %v911
    %v987 = vpack.c.b16 %v914, %v913
    %v988 = vpack.c.b16 %v916, %v915
    %v989 = vpack.c.b16 %v918, %v917
    %v990 = vpack.c.b16 %v920, %v919
    %v991 = vpack.c.b16 %v922, %v921
    %v992 = vpack.c.b16 %v924, %v923
    %v993 = vpack.c.b16 %v926, %v925
    %v994 = vpack.c.b16 %v928, %v927
    %v995 = vpack.c.b16 %v930, %v929
    %v996 = vpack.c.b16 %v932, %v931
    %v997 = vpack.c.b16 %v934, %v933
    %v998 = vpack.c.b16 %v936, %v935
    %v999 = vpack.c.b16 %v938, %v937
    %v1000 = vpack.c.b16 %v940, %v939
    %v1001 = vpack.c.b16 %v942, %v941
    %v1002 = vpack.c.b16 %v944, %v943
    %v1003 = vpack.c.b16 %v946, %v945
    %v1004 = vpack.c.b16 %v948, %v947
    %v1005 = vpack.c.b16 %v950, %v949
    %v1006 = vpack.c.b16 %v952, %v951
    %v1007 = vpack.c.b16 %v954, %v953
    %v1008 = vpack.c.b16 %v956, %v955
    %v1009 = vpack.c.b16 %v958, %v957
    %v1010 = vpack.c.b16 %v960, %v959
    %v1011 = vpack.c.b16 %v962, %v961
    %v1062 = vsel %vm491, %v668, 0
    %1064 = vmatprep.subr.bf16.mxu0 0
    %1065 = vmatpush1.bf16.msra.mxu0 %v963
    %1066 = vmatprep.subr.bf16.mxu0 0
    %1067 = vmatpush1.bf16.msra.mxu0 %v964
    %1068 = vmatprep.subr.bf16.mxu0 0
    %1069 = vmatpush1.bf16.msra.mxu0 %v965
    %1070 = vmatprep.subr.bf16.mxu0 0
    %1071 = vmatpush1.bf16.msra.mxu0 %v966
    %1072 = vmatprep.subr.bf16.mxu0 0
    %1073 = vmatpush1.bf16.msra.mxu0 %v967
    %1074 = vmatprep.subr.bf16.mxu0 0
    %1075 = vmatpush1.bf16.msra.mxu0 %v968
    %1076 = vmatprep.subr.bf16.mxu0 0
    %1077 = vmatpush1.bf16.msra.mxu0 %v969
    %1078 = vmatprep.subr.bf16.mxu0 0
    %1079 = vmatpush1.bf16.msra.mxu0 %v970
    %1080 = vmatprep.subr.bf16.mxu0 0
    %1081 = vmatpush1.bf16.msra.mxu0 %v971
    %1082 = vmatprep.subr.bf16.mxu0 0
    %1083 = vmatpush1.bf16.msra.mxu0 %v972
    %1084 = vmatprep.subr.bf16.mxu0 0
    %1085 = vmatpush1.bf16.msra.mxu0 %v973
    %1086 = vmatprep.subr.bf16.mxu0 0
    %1087 = vmatpush1.bf16.msra.mxu0 %v974
    %1088 = vmatprep.subr.bf16.mxu0 0
    %1089 = vmatpush1.bf16.msra.mxu0 %v975
    %1090 = vmatprep.subr.bf16.mxu0 0
    %1091 = vmatpush1.bf16.msra.mxu0 %v976
    %1092 = vmatprep.subr.bf16.mxu0 0
    %1093 = vmatpush1.bf16.msra.mxu0 %v977
    %1094 = vmatprep.subr.bf16.mxu0 0
    %1095 = vmatpush1.bf16.msra.mxu0 %v978
    %1096 = vmatprep.mubr.bf16.mxu0 %v663
    %1097 = vmatmul.mubr.bf16.gmra.mrb[0].mxu0 %v662
    %v1098 = vpop.f32.mrb[0].mxu0
    %v1099 = vadd.f32 1e-08, %v1098
    %v1100 = vpop.f32.mrb[0].mxu0
    %v1101 = vpop.f32.mrb[0].mxu0
    %v1102 = vpop.f32.mrb[0].mxu0
    %1103 = vdwg.mxu0
    %1104 = vmatprep.subr.bf16.mxu0 0
    %1105 = vmatpush1.bf16.msra.mxu0 %v979
    %1106 = vmatprep.subr.bf16.mxu0 0
    %1107 = vmatpush1.bf16.msra.mxu0 %v980
    %1108 = vmatprep.subr.bf16.mxu0 0
    %1109 = vmatpush1.bf16.msra.mxu0 %v981
    %1110 = vmatprep.subr.bf16.mxu0 0
    %1111 = vmatpush1.bf16.msra.mxu0 %v982
    %1112 = vmatprep.subr.bf16.mxu0 0
    %1113 = vmatpush1.bf16.msra.mxu0 %v983
    %1114 = vmatprep.subr.bf16.mxu0 0
    %1115 = vmatpush1.bf16.msra.mxu0 %v984
    %1116 = vmatprep.subr.bf16.mxu0 0
    %1117 = vmatpush1.bf16.msra.mxu0 %v985
    %1118 = vmatprep.subr.bf16.mxu0 0
    %1119 = vmatpush1.bf16.msra.mxu0 %v986
    %1120 = vmatprep.subr.bf16.mxu0 0
    %1121 = vmatpush1.bf16.msra.mxu0 %v987
    %1122 = vmatprep.subr.bf16.mxu0 0
    %1123 = vmatpush1.bf16.msra.mxu0 %v988
    %1124 = vmatprep.subr.bf16.mxu0 0
    %1125 = vmatpush1.bf16.msra.mxu0 %v989
    %1126 = vmatprep.subr.bf16.mxu0 0
    %1127 = vmatpush1.bf16.msra.mxu0 %v990
    %1128 = vmatprep.subr.bf16.mxu0 0
    %1129 = vmatpush1.bf16.msra.mxu0 %v991
    %1130 = vmatprep.subr.bf16.mxu0 0
    %1131 = vmatpush1.bf16.msra.mxu0 %v992
    %1132 = vmatprep.subr.bf16.mxu0 0
    %1133 = vmatpush1.bf16.msra.mxu0 %v993
    %1134 = vmatprep.subr.bf16.mxu0 0
    %1135 = vmatpush1.bf16.msra.mxu0 %v994
    %1136 = vmatprep.mubr.bf16.mxu0 %v665
    %1137 = vmatmul.mubr.bf16.gmra.mrb[0].mxu0 %v664
    %v1138 = vpop.f32.mrb[0].mxu0
    %v1139 = vadd.f32 %v1099, %v1138
    %v1140 = vpop.f32.mrb[0].mxu0
    %v1141 = vpop.f32.mrb[0].mxu0
    %v1142 = vpop.f32.mrb[0].mxu0
    %1143 = vdwg.mxu0
    %1144 = vmatprep.subr.bf16.mxu0 0
    %1145 = vmatpush1.bf16.msra.mxu0 %v995
    %1146 = vmatprep.subr.bf16.mxu0 0
    %1147 = vmatpush1.bf16.msra.mxu0 %v996
    %1148 = vmatprep.subr.bf16.mxu0 0
    %1149 = vmatpush1.bf16.msra.mxu0 %v997
    %1150 = vmatprep.subr.bf16.mxu0 0
    %1151 = vmatpush1.bf16.msra.mxu0 %v998
    %1152 = vmatprep.subr.bf16.mxu0 0
    %1153 = vmatpush1.bf16.msra.mxu0 %v999
    %1154 = vmatprep.subr.bf16.mxu0 0
    %1155 = vmatpush1.bf16.msra.mxu0 %v1000
    %1156 = vmatprep.subr.bf16.mxu0 0
    %1157 = vmatpush1.bf16.msra.mxu0 %v1001
    %1158 = vmatprep.subr.bf16.mxu0 0
    %1159 = vmatpush1.bf16.msra.mxu0 %v1002
    %1160 = vmatprep.subr.bf16.mxu0 0
    %1161 = vmatpush1.bf16.msra.mxu0 %v1003
    %1162 = vmatprep.subr.bf16.mxu0 0
    %1163 = vmatpush1.bf16.msra.mxu0 %v1004
    %1164 = vmatprep.subr.bf16.mxu0 0
    %1165 = vmatpush1.bf16.msra.mxu0 %v1005
    %1166 = vmatprep.subr.bf16.mxu0 0
    %1167 = vmatpush1.bf16.msra.mxu0 %v1006
    %1168 = vmatprep.subr.bf16.mxu0 0
    %1169 = vmatpush1.bf16.msra.mxu0 %v1007
    %1170 = vmatprep.subr.bf16.mxu0 0
    %1171 = vmatpush1.bf16.msra.mxu0 %v1008
    %1172 = vmatprep.subr.bf16.mxu0 0
    %1173 = vmatpush1.bf16.msra.mxu0 %v1009
    %1174 = vmatprep.subr.bf16.mxu0 0
    %1175 = vmatpush1.bf16.msra.mxu0 %v1010
    %1176 = vmatprep.mubr.bf16.mxu0 %v667
    %1177 = vmatmul.mubr.bf16.gmra.mrb[0].mxu0 %v666
    %v1178 = vpop.f32.mrb[0].mxu0
    %v1179 = vadd.f32 %v1139, %v1178
    %v1180 = vpop.f32.mrb[0].mxu0
    %v1181 = vpop.f32.mrb[0].mxu0
    %v1182 = vpop.f32.mrb[0].mxu0
    %1183 = vdwg.mxu0
    %1184 = vmatprep.subr.bf16.mxu0 0
    %1185 = vmatpush1.bf16.msra.mxu0 %v1011
    %1186 = vmatprep.subr.bf16.mxu0 0
    %1187 = vmatpush1.bf16.msra.mxu0 0
    %1188 = vmatprep.subr.bf16.mxu0 0
    %1189 = vmatpush1.bf16.msra.mxu0 0
    %1190 = vmatprep.subr.bf16.mxu0 0
    %1191 = vmatpush1.bf16.msra.mxu0 0
    %1192 = vmatprep.subr.bf16.mxu0 0
    %1193 = vmatpush1.bf16.msra.mxu0 0
    %1194 = vmatprep.subr.bf16.mxu0 0
    %1195 = vmatpush1.bf16.msra.mxu0 0
    %1196 = vmatprep.subr.bf16.mxu0 0
    %1197 = vmatpush1.bf16.msra.mxu0 0
    %1198 = vmatprep.subr.bf16.mxu0 0
    %1199 = vmatpush1.bf16.msra.mxu0 0
    %1200 = vmatprep.subr.bf16.mxu0 0
    %1201 = vmatpush1.bf16.msra.mxu0 0
    %1202 = vmatprep.subr.bf16.mxu0 0
    %1203 = vmatpush1.bf16.msra.mxu0 0
    %1204 = vmatprep.subr.bf16.mxu0 0
    %1205 = vmatpush1.bf16.msra.mxu0 0
    %1206 = vmatprep.subr.bf16.mxu0 0
    %1207 = vmatpush1.bf16.msra.mxu0 0
    %1208 = vmatprep.subr.bf16.mxu0 0
    %1209 = vmatpush1.bf16.msra.mxu0 0
    %1210 = vmatprep.subr.bf16.mxu0 0
    %1211 = vmatpush1.bf16.msra.mxu0 0
    %1212 = vmatprep.subr.bf16.mxu0 0
    %1213 = vmatpush1.bf16.msra.mxu0 0
    %1214 = vmatprep.subr.bf16.mxu0 0
    %1215 = vmatpush1.bf16.msra.mxu0 0
    %1216 = vmatprep.mubr.bf16.mxu0 0
    %1217 = vmatmul.mubr.bf16.gmra.mrb[0].mxu0 %v1062
    %v1218 = vpop.f32.mrb[0].mxu0
    %v1219 = vadd.f32 %v1179, %v1218
    %v1220 = vpop.f32.mrb[0].mxu0
    %v1221 = vpop.f32.mrb[0].mxu0
    %v1222 = vpop.f32.mrb[0].mxu0
    %1223 = vdwg.mxu0
    %v1224 = vrsqrt.pop %v1219
    %v1225 = vmul.f32 %v650, %v1224
    %v1226 = vmul.f32 %v1225, 0.70710677
    %v1227 = verf.f32.pop %v1226
    %v1228 = vadd.f32 %v1227, 1.0
    %v1229 = vmul.f32 %v1228, 0.5
    %v1230 = vpack.c.bf16 %v1229, %v1229
    %v1231 = vld [vmem:[#allocation8] sm:$0xf]
    %v1232 = vld [vmem:[#allocation8 + $0x4] sm:$0xf]
    %v1233 = vld [vmem:[#allocation8 + $0x8] sm:$0xf]
    %v1234 = vld [vmem:[#allocation8 + $0xc] sm:$0xf]
    %v1235 = vld [vmem:[#allocation8 + $0x10] sm:$0xf]
    %v1236 = vld [vmem:[#allocation8 + $0x14] sm:$0xf]
    %v1237 = vld [vmem:[#allocation8 + $0x18] sm:$0xf]
    %v1238 = vld [vmem:[#allocation8 + $0x1c] sm:$0xf]
    %v1239 = vld [vmem:[#allocation8 + $0x20] sm:$0xf]
    %v1240 = vld [vmem:[#allocation8 + $0x24] sm:$0xf]
    %v1241 = vld [vmem:[#allocation8 + $0x28] sm:$0xf]
    %v1242 = vld [vmem:[#allocation8 + $0x2c] sm:$0xf]
    %v1243 = vld [vmem:[#allocation8 + $0x30] sm:$0xf]
    %v1244 = vld [vmem:[#allocation8 + $0x34] sm:$0xf]
    %v1245 = vld [vmem:[#allocation8 + $0x38] sm:$0xf]
    %v1246 = vld [vmem:[#allocation8 + $0x3c] sm:$0xf]
    %v1247 = vld [vmem:[%s5] sm:$0x1]
    %v1249 = vlaneseq
    %v1250 = vshrl.u32 %v1249, 7
    %v1251 = vsub.s32 0, %v1250
    %v1252 = vrot.slane %v1247, %v1251
    %v1270 = vunpack.c.l.b16 %v1231
    %v1271 = vunpack.c.l.b16 %v1232
    %v1272 = vunpack.c.l.b16 %v1233
    %v1273 = vunpack.c.l.b16 %v1234
    %v1274 = vunpack.c.l.b16 %v1235
    %v1275 = vunpack.c.l.b16 %v1236
    %v1276 = vunpack.c.l.b16 %v1237
    %v1277 = vunpack.c.l.b16 %v1238
    %v1278 = vunpack.c.l.b16 %v1239
    %v1279 = vunpack.c.l.b16 %v1240
    %v1280 = vunpack.c.l.b16 %v1241
    %v1281 = vunpack.c.l.b16 %v1242
    %v1282 = vunpack.c.l.b16 %v1243
    %v1283 = vunpack.c.l.b16 %v1244
    %v1284 = vunpack.c.l.b16 %v1245
    %v1285 = vunpack.c.l.b16 %v1246
    %v1286 = vpack.c.b16 %v1271, %v1270
    %v1287 = vpack.c.b16 %v1273, %v1272
    %v1288 = vpack.c.b16 %v1275, %v1274
    %v1289 = vpack.c.b16 %v1277, %v1276
    %v1290 = vpack.c.b16 %v1279, %v1278
    %v1291 = vpack.c.b16 %v1281, %v1280
    %v1292 = vpack.c.b16 %v1283, %v1282
    %v1293 = vpack.c.b16 %v1285, %v1284
    %1302 = vmatprep.subr.bf16.mxu0 0
    %1303 = vmatpush1.bf16.msra.mxu0 %v1286
    %1304 = vmatprep.subr.bf16.mxu0 0
    %1305 = vmatpush1.bf16.msra.mxu0 %v1287
    %1306 = vmatprep.subr.bf16.mxu0 0
    %1307 = vmatpush1.bf16.msra.mxu0 %v1288
    %1308 = vmatprep.subr.bf16.mxu0 0
    %1309 = vmatpush1.bf16.msra.mxu0 %v1289
    %1310 = vmatprep.subr.bf16.mxu0 0
    %1311 = vmatpush1.bf16.msra.mxu0 %v1290
    %1312 = vmatprep.subr.bf16.mxu0 0
    %1313 = vmatpush1.bf16.msra.mxu0 %v1291
    %1314 = vmatprep.subr.bf16.mxu0 0
    %1315 = vmatpush1.bf16.msra.mxu0 %v1292
    %1316 = vmatprep.subr.bf16.mxu0 0
    %1317 = vmatpush1.bf16.msra.mxu0 %v1293
    %1318 = vmatprep.subr.bf16.mxu0 0
    %1319 = vmatpush1.bf16.msra.mxu0 0
    %1320 = vmatprep.subr.bf16.mxu0 0
    %1321 = vmatpush1.bf16.msra.mxu0 0
    %1322 = vmatprep.subr.bf16.mxu0 0
    %1323 = vmatpush1.bf16.msra.mxu0 0
    %1324 = vmatprep.subr.bf16.mxu0 0
    %1325 = vmatpush1.bf16.msra.mxu0 0
    %1326 = vmatprep.subr.bf16.mxu0 0
    %1327 = vmatpush1.bf16.msra.mxu0 0
    %1328 = vmatprep.subr.bf16.mxu0 0
    %1329 = vmatpush1.bf16.msra.mxu0 0
    %1330 = vmatprep.subr.bf16.mxu0 0
    %1331 = vmatpush1.bf16.msra.mxu0 0
    %1332 = vmatprep.subr.bf16.mxu0 0
    %1333 = vmatpush1.bf16.msra.mxu0 0
    %1334 = vmatprep.mubr.bf16.mxu0 0
    %1335 = vmatmul.mubr.bf16.gmra.mrb[0].mxu0 %v1230
    %v1336 = vpop.f32.mrb[0].mxu0
    %v1337 = vadd.f32 %v1252, %v1336
    %v1338 = vpop.f32.mrb[0].mxu0
    %v1339 = vpop.f32.mrb[0].mxu0
    %v1340 = vpop.f32.mrb[0].mxu0
    %1341 = vdwg.mxu0
    %1342 = vst [vmem:[#allocation10] sm:$0xff] %v1337
    // Predicated region
    $region42: #{tpu_custom_call.1} parent=1 // pred_check
      _
    $region43: #{tpu_custom_call.1} parent=1 // pred_check_branch
      %1344 = sbr.rel (0) target = $region45
    $region44: #{tpu_custom_call.1} parent=1 // pred_region
      %s1346 = ssub.s32 128, 128
      %1347 = vsyncadd [#allocation4], %s1346
      %s1349 = sshll.u32 [#allocation10], 4
      %s1350 = int_to_ptr.vmem [resolvable:$true] %s1349
      %1352 = dma.vmem_to_hbm [thread:$0]  %s1350, 128, %s6, [#allocation4]
    $region45: #{tpu_custom_call.1} parent=1 // pred_fallthru
      _
    // Predicated region
    $region46: #{tpu_custom_call.1} parent=1 // pred_check
      _
    $region47: #{tpu_custom_call.1} parent=1 // pred_check_branch
      %1354 = sbr.rel (0) target = $region49
    $region48: #{tpu_custom_call.1} parent=1 // pred_region
      %1355 = dma.done [#allocation4], 128
    $region49: #{tpu_custom_call.1} parent=1 // pred_fallthru
      _
    %1356 = vsyncpa [#allocation3], 1
    %1357 = vsyncpa [#allocation6], 1
    %1358 = vsyncpa [#allocation9], 1
    %1359 = vsyncpa [#allocation4], 1

</llo_original>
